<compile_context>
chip_gen: v5e
topology: v5e:2x2
jax: 0.10.0
libtpu: 0.0.40
codegen_flags: <defaults>
</compile_context>

<pallas_src>
import numpy as np
import jax
import jax.numpy as jnp
from jax.experimental import pallas as pl
from jax.experimental.pallas import tpu as pltpu

# ---------------- model config (small, consistent with module) --------------
T = 8            # sequence length
B = 2            # batch
C = 32           # embedding_dim
H = 4            # num_attention_heads
HEAD_DIM = C // H
FFN = 64         # ffn_embedding_dim
LN_EPS = 1e-5
SCALE = HEAD_DIM ** -0.5
BT = B * T


# ------------------------------- kernel -------------------------------------
def encoder_layer_kernel(x_ref,
                         wqkv_ref, bqkv_ref,
                         wo_ref, bo_ref,
                         g1_ref, be1_ref,
                         w1_ref, bf1_ref, w2_ref, bf2_ref,
                         g2_ref, be2_ref,
                         out_ref, lres_ref):
    x = x_ref[...]                                            # (B*T, C)

    # --- fused self-attention Q/K/V projection (q pre-scaled in wrapper) ---
    qkv = jnp.dot(x, wqkv_ref[...],
                  preferred_element_type=jnp.float32) + bqkv_ref[...]   # (B*T, 3C)

    # --- per-head attention, batched over B (static unroll over H=4 heads) ---
    ctx_heads = []
    for h in range(H):
        lo = h * HEAD_DIM
        qh = qkv[:, lo:lo + HEAD_DIM].reshape(B, T, HEAD_DIM)
        kh = qkv[:, C + lo:C + lo + HEAD_DIM].reshape(B, T, HEAD_DIM)
        vh = qkv[:, 2 * C + lo:2 * C + lo + HEAD_DIM].reshape(B, T, HEAD_DIM)
        s = jnp.einsum('bqd,bkd->bqk', qh, kh,
                       preferred_element_type=jnp.float32)              # (B, T, T)
        s = s - jnp.max(s, axis=-1, keepdims=True)
        p = jnp.exp(s)
        # EUP reciprocal instead of VPU divide (approx=False keeps 1e-4 tol).
        p = p * pl.reciprocal(jnp.sum(p, axis=-1, keepdims=True), approx=False)
        ctx = jnp.einsum('bqk,bkd->bqd', p, vh,
                         preferred_element_type=jnp.float32)            # (B, T, hd)
        ctx_heads.append(ctx.reshape(BT, HEAD_DIM))
    ctx_all = jnp.concatenate(ctx_heads, axis=-1)                       # (B*T, C)

    # --- single output projection ---
    attn_out = jnp.dot(ctx_all, wo_ref[...],
                       preferred_element_type=jnp.float32) + bo_ref[...]

    # --- residual + self_attn_layer_norm ---
    x1 = x + attn_out
    mu1 = jnp.mean(x1, axis=-1, keepdims=True)
    var1 = jnp.mean((x1 - mu1) ** 2, axis=-1, keepdims=True)
    x1n = (x1 - mu1) * jax.lax.rsqrt(var1 + LN_EPS) * g1_ref[...] + be1_ref[...]

    # --- FFN: relu(fc1) -> fc2 ---
    h1 = jnp.dot(x1n, w1_ref[...], preferred_element_type=jnp.float32) + bf1_ref[...]
    h1 = jnp.maximum(h1, 0.0)
    h2 = jnp.dot(h1, w2_ref[...], preferred_element_type=jnp.float32) + bf2_ref[...]
    lres_ref[...] = h2                                                  # layer_result

    # --- residual + final_layer_norm ---
    x2 = x1n + h2
    mu2 = jnp.mean(x2, axis=-1, keepdims=True)
    var2 = jnp.mean((x2 - mu2) ** 2, axis=-1, keepdims=True)
    out_ref[...] = (x2 - mu2) * jax.lax.rsqrt(var2 + LN_EPS) * g2_ref[...] + be2_ref[...]


# ------------------------------- wrapper -------------------------------------
def transformer_encoder_layer(x_tbc, params):
    """x_tbc: (T, B, C) float32.  Returns (out (T,B,C), (None, layer_result (T,B,C)))."""
    # (T, B, C) -> (B*T, C) flat slab (pure layout plumbing, outside the kernel)
    x_2d = jnp.transpose(x_tbc, (1, 0, 2)).reshape(BT, C)

    # Host-side param prep: fuse QKV weights, fold fairseq q-scale into q part.
    wqkv = jnp.concatenate([params["wq"] * SCALE, params["wk"], params["wv"]], axis=1)  # (C, 3C)
    bqkv = jnp.concatenate([params["bq"] * SCALE, params["bk"], params["bv"]], axis=1)  # (1, 3C)

    full = lambda shape: pl.BlockSpec(shape, lambda i: (0, 0))
    in_specs = [
        full((BT, C)),                                   # x
        full((C, 3 * C)), full((1, 3 * C)),              # fused Wqkv, bqkv
        full((C, C)), full((1, C)),                      # wo, bo
        full((1, C)), full((1, C)),                      # ln1 gamma, beta
        full((C, FFN)), full((1, FFN)),                  # fc1
        full((FFN, C)), full((1, C)),                    # fc2
        full((1, C)), full((1, C)),                      # ln2 gamma, beta
    ]
    out_specs = [full((BT, C)), full((BT, C))]
    out_shape = (
        jax.ShapeDtypeStruct((BT, C), jnp.float32),
        jax.ShapeDtypeStruct((BT, C), jnp.float32),
    )

    out_2d, lres_2d = pl.pallas_call(
        encoder_layer_kernel,
        out_shape=out_shape,
        grid=(1,),                                       # single grid point (B folded)
        in_specs=in_specs,
        out_specs=out_specs,
        compiler_params=pltpu.CompilerParams(dimension_semantics=("arbitrary",)),
    )(x_2d, wqkv, bqkv,
      params["wo"], params["bo"],
      params["ln1_g"], params["ln1_b"],
      params["w1"], params["b1"], params["w2"], params["b2"],
      params["ln2_g"], params["ln2_b"])

    out = jnp.transpose(out_2d.reshape(B, T, C), (1, 0, 2))          # back to (T, B, C)
    layer_result = jnp.transpose(lres_2d.reshape(B, T, C), (1, 0, 2))
    return out, (None, layer_result)                     # attn is None (need_weights=False)


# --------------------------- pure-JAX reference -------------------------------
def reference(x_tbc, p):
    def ln(x, g, b):
        mu = jnp.mean(x, -1, keepdims=True)
        var = jnp.mean((x - mu) ** 2, -1, keepdims=True)
        return (x - mu) * jax.lax.rsqrt(var + LN_EPS) * g + b

    x = jnp.transpose(x_tbc, (1, 0, 2))                       # (B, T, C)
    q = (x @ p["wq"] + p["bq"]) * SCALE
    k = x @ p["wk"] + p["bk"]
    v = x @ p["wv"] + p["bv"]
    q = q.reshape(B, T, H, HEAD_DIM).transpose(0, 2, 1, 3)
    k = k.reshape(B, T, H, HEAD_DIM).transpose(0, 2, 1, 3)
    v = v.reshape(B, T, H, HEAD_DIM).transpose(0, 2, 1, 3)
    s = jnp.einsum("bhqd,bhkd->bhqk", q, k)
    pattn = jax.nn.softmax(s, axis=-1)
    ctx = jnp.einsum("bhqk,bhkd->bhqd", pattn, v)
    ctx = ctx.transpose(0, 2, 1, 3).reshape(B, T, C)
    attn_out = ctx @ p["wo"] + p["bo"]
    x1 = x + attn_out
    x1n = ln(x1, p["ln1_g"], p["ln1_b"])
    h2 = jnp.maximum(x1n @ p["w1"] + p["b1"], 0.0) @ p["w2"] + p["b2"]
    out = ln(x1n + h2, p["ln2_g"], p["ln2_b"])
    return (jnp.transpose(out, (1, 0, 2)),
            jnp.transpose(h2, (1, 0, 2)))


# ------------------------------- main ----------------------------------------
if __name__ == "__main__":
    key = jax.random.PRNGKey(0)
    keys = jax.random.split(key, 16)

    def w(k, shape, scale=0.05):
        return (scale * jax.random.normal(k, shape)).astype(jnp.float32)

    params = {
        # nn.Linear weights are (out, in) in torch; stored here pre-transposed to (in, out).
        "wq": w(keys[0], (C, C)),  "bq": w(keys[1], (1, C)),
        "wk": w(keys[2], (C, C)),  "bk": w(keys[3], (1, C)),
        "wv": w(keys[4], (C, C)),  "bv": w(keys[5], (1, C)),
        "wo": w(keys[6], (C, C)),  "bo": w(keys[7], (1, C)),
        "ln1_g": jnp.ones((1, C), jnp.float32),
        "ln1_b": jnp.zeros((1, C), jnp.float32),
        "w1": w(keys[8], (C, FFN)),  "b1": w(keys[9], (1, FFN)),
        "w2": w(keys[10], (FFN, C)), "b2": w(keys[11], (1, C)),
        "ln2_g": jnp.ones((1, C), jnp.float32),
        "ln2_b": jnp.zeros((1, C), jnp.float32),
    }

    x = jax.random.normal(keys[12], (T, B, C), dtype=jnp.float32)

    out, (attn, layer_result) = transformer_encoder_layer(x, params)
    out = jax.block_until_ready(out)
    layer_result = jax.block_until_ready(layer_result)

    ref_out, ref_lres = reference(x, params)
    np.testing.assert_allclose(np.asarray(out), np.asarray(ref_out), rtol=1e-4, atol=1e-4)
    np.testing.assert_allclose(np.asarray(layer_result), np.asarray(ref_lres),
                               rtol=1e-4, atol=1e-4)

    print("KERNEL_OK")
</pallas_src>

<mosaic_0001>
module attributes {stable_mosaic.version = 11 : i64} {
  func.func @encoder_layer_kernel(%arg0: i32, %arg1: memref<16x32xf32, #tpu.memory_space<vmem>>, %arg2: memref<32x96xf32, #tpu.memory_space<vmem>>, %arg3: memref<1x96xf32, #tpu.memory_space<vmem>>, %arg4: memref<32x32xf32, #tpu.memory_space<vmem>>, %arg5: memref<1x32xf32, #tpu.memory_space<vmem>>, %arg6: memref<1x32xf32, #tpu.memory_space<vmem>>, %arg7: memref<1x32xf32, #tpu.memory_space<vmem>>, %arg8: memref<32x64xf32, #tpu.memory_space<vmem>>, %arg9: memref<1x64xf32, #tpu.memory_space<vmem>>, %arg10: memref<64x32xf32, #tpu.memory_space<vmem>>, %arg11: memref<1x32xf32, #tpu.memory_space<vmem>>, %arg12: memref<1x32xf32, #tpu.memory_space<vmem>>, %arg13: memref<1x32xf32, #tpu.memory_space<vmem>>, %arg14: memref<16x32xf32, #tpu.memory_space<vmem>>, %arg15: memref<16x32xf32, #tpu.memory_space<vmem>>) attributes {dimension_semantics = [#tpu.dimension_semantics<arbitrary>], iteration_bounds = array<i64: 1>, scalar_prefetch = 0 : i64, scratch_operands = 0 : i64, tpu.core_type = #tpu.core_type<tc>, window_params = [{pipeline_mode = #tpu.pipeline_mode<synchronous>, transform_indices = @transform_0, window_bounds = array<i64: 16, 32>}, {pipeline_mode = #tpu.pipeline_mode<synchronous>, transform_indices = @transform_1, window_bounds = array<i64: 32, 96>}, {pipeline_mode = #tpu.pipeline_mode<synchronous>, transform_indices = @transform_2, window_bounds = array<i64: 1, 96>}, {pipeline_mode = #tpu.pipeline_mode<synchronous>, transform_indices = @transform_3, window_bounds = array<i64: 32, 32>}, {pipeline_mode = #tpu.pipeline_mode<synchronous>, transform_indices = @transform_4, window_bounds = array<i64: 1, 32>}, {pipeline_mode = #tpu.pipeline_mode<synchronous>, transform_indices = @transform_5, window_bounds = array<i64: 1, 32>}, {pipeline_mode = #tpu.pipeline_mode<synchronous>, transform_indices = @transform_6, window_bounds = array<i64: 1, 32>}, {pipeline_mode = #tpu.pipeline_mode<synchronous>, transform_indices = @transform_7, window_bounds = array<i64: 32, 64>}, {pipeline_mode = #tpu.pipeline_mode<synchronous>, transform_indices = @transform_8, window_bounds = array<i64: 1, 64>}, {pipeline_mode = #tpu.pipeline_mode<synchronous>, transform_indices = @transform_9, window_bounds = array<i64: 64, 32>}, {pipeline_mode = #tpu.pipeline_mode<synchronous>, transform_indices = @transform_10, window_bounds = array<i64: 1, 32>}, {pipeline_mode = #tpu.pipeline_mode<synchronous>, transform_indices = @transform_11, window_bounds = array<i64: 1, 32>}, {pipeline_mode = #tpu.pipeline_mode<synchronous>, transform_indices = @transform_12, window_bounds = array<i64: 1, 32>}, {pipeline_mode = #tpu.pipeline_mode<synchronous>, transform_indices = @transform_13, window_bounds = array<i64: 16, 32>}, {pipeline_mode = #tpu.pipeline_mode<synchronous>, transform_indices = @transform_14, window_bounds = array<i64: 16, 32>}]} {
    %c0 = arith.constant 0 : index
    %c0_0 = arith.constant 0 : index
    %0 = vector.load %arg1[%c0, %c0_0] : memref<16x32xf32, #tpu.memory_space<vmem>>, vector<16x32xf32>
    %c0_1 = arith.constant 0 : index
    %c0_2 = arith.constant 0 : index
    %1 = vector.load %arg2[%c0_1, %c0_2] : memref<32x96xf32, #tpu.memory_space<vmem>>, vector<32x96xf32>
    %cst = arith.constant dense<0.000000e+00> : vector<16x96xf32>
    %2 = tpu.matmul %0, %1, %cst {dimension_numbers = #tpu.dot_dimension_numbers<[1], [0], [0], [1], [0, 0, 1, 1], [], []>} : vector<16x32xf32>, vector<32x96xf32>, vector<16x96xf32> -> vector<16x96xf32>
    %c0_3 = arith.constant 0 : index
    %c0_4 = arith.constant 0 : index
    %3 = vector.load %arg3[%c0_3, %c0_4] : memref<1x96xf32, #tpu.memory_space<vmem>>, vector<1x96xf32>
    %4 = vector.broadcast %3 : vector<1x96xf32> to vector<16x96xf32>
    %5 = arith.addf %2, %4 : vector<16x96xf32>
    %6 = vector.extract_strided_slice %5 {offsets = [0, 0], sizes = [16, 8], strides = [1, 1]} : vector<16x96xf32> to vector<16x8xf32>
    %7 = vector.shape_cast %6 : vector<16x8xf32> to vector<2x8x8xf32>
    %8 = vector.extract_strided_slice %5 {offsets = [0, 32], sizes = [16, 8], strides = [1, 1]} : vector<16x96xf32> to vector<16x8xf32>
    %9 = vector.shape_cast %8 : vector<16x8xf32> to vector<2x8x8xf32>
    %10 = vector.extract_strided_slice %5 {offsets = [0, 64], sizes = [16, 8], strides = [1, 1]} : vector<16x96xf32> to vector<16x8xf32>
    %11 = vector.shape_cast %10 : vector<16x8xf32> to vector<2x8x8xf32>
    "tpu.trace_start"() <{level = 10 : i32, message = "bqd,bkd->bqk"}> : () -> ()
    %cst_5 = arith.constant dense<0.000000e+00> : vector<2x8x8xf32>
    %12 = tpu.matmul %7, %9, %cst_5 {dimension_numbers = #tpu.dot_dimension_numbers<[2], [2], [1], [1], [0, 0, 0, 1, 1, 1], [0], [0]>} : vector<2x8x8xf32>, vector<2x8x8xf32>, vector<2x8x8xf32> -> vector<2x8x8xf32>
    "tpu.trace_stop"() : () -> ()
    %cst_6 = arith.constant dense<0xFF800000> : vector<2x8xf32>
    %13 = vector.multi_reduction <maximumf>, %12, %cst_6 [2] : vector<2x8x8xf32> to vector<2x8xf32>
    %14 = vector.shape_cast %13 : vector<2x8xf32> to vector<2x8x1xf32>
    %15 = vector.broadcast %14 : vector<2x8x1xf32> to vector<2x8x8xf32>
    %16 = arith.subf %12, %15 : vector<2x8x8xf32>
    %17 = math.exp %16 : vector<2x8x8xf32>
    %cst_7 = arith.constant dense<0.000000e+00> : vector<2x8xf32>
    %18 = vector.multi_reduction <add>, %17, %cst_7 [2] : vector<2x8x8xf32> to vector<2x8xf32>
    %19 = vector.shape_cast %18 : vector<2x8xf32> to vector<2x8x1xf32>
    %20 = tpu.reciprocal %19 : vector<2x8x1xf32> -> vector<2x8x1xf32>
    %21 = vector.broadcast %20 : vector<2x8x1xf32> to vector<2x8x8xf32>
    %22 = arith.mulf %17, %21 : vector<2x8x8xf32>
    "tpu.trace_start"() <{level = 10 : i32, message = "bqk,bkd->bqd"}> : () -> ()
    %cst_8 = arith.constant dense<0.000000e+00> : vector<2x8x8xf32>
    %23 = tpu.matmul %22, %11, %cst_8 {dimension_numbers = #tpu.dot_dimension_numbers<[2], [1], [1], [2], [0, 0, 0, 1, 1, 2], [0], [0]>} : vector<2x8x8xf32>, vector<2x8x8xf32>, vector<2x8x8xf32> -> vector<2x8x8xf32>
    "tpu.trace_stop"() : () -> ()
    %24 = vector.shape_cast %23 : vector<2x8x8xf32> to vector<16x8xf32>
    %25 = vector.extract_strided_slice %5 {offsets = [0, 8], sizes = [16, 8], strides = [1, 1]} : vector<16x96xf32> to vector<16x8xf32>
    %26 = vector.shape_cast %25 : vector<16x8xf32> to vector<2x8x8xf32>
    %27 = vector.extract_strided_slice %5 {offsets = [0, 40], sizes = [16, 8], strides = [1, 1]} : vector<16x96xf32> to vector<16x8xf32>
    %28 = vector.shape_cast %27 : vector<16x8xf32> to vector<2x8x8xf32>
    %29 = vector.extract_strided_slice %5 {offsets = [0, 72], sizes = [16, 8], strides = [1, 1]} : vector<16x96xf32> to vector<16x8xf32>
    %30 = vector.shape_cast %29 : vector<16x8xf32> to vector<2x8x8xf32>
    "tpu.trace_start"() <{level = 10 : i32, message = "bqd,bkd->bqk"}> : () -> ()
    %cst_9 = arith.constant dense<0.000000e+00> : vector<2x8x8xf32>
    %31 = tpu.matmul %26, %28, %cst_9 {dimension_numbers = #tpu.dot_dimension_numbers<[2], [2], [1], [1], [0, 0, 0, 1, 1, 1], [0], [0]>} : vector<2x8x8xf32>, vector<2x8x8xf32>, vector<2x8x8xf32> -> vector<2x8x8xf32>
    "tpu.trace_stop"() : () -> ()
    %cst_10 = arith.constant dense<0xFF800000> : vector<2x8xf32>
    %32 = vector.multi_reduction <maximumf>, %31, %cst_10 [2] : vector<2x8x8xf32> to vector<2x8xf32>
    %33 = vector.shape_cast %32 : vector<2x8xf32> to vector<2x8x1xf32>
    %34 = vector.broadcast %33 : vector<2x8x1xf32> to vector<2x8x8xf32>
    %35 = arith.subf %31, %34 : vector<2x8x8xf32>
    %36 = math.exp %35 : vector<2x8x8xf32>
    %cst_11 = arith.constant dense<0.000000e+00> : vector<2x8xf32>
    %37 = vector.multi_reduction <add>, %36, %cst_11 [2] : vector<2x8x8xf32> to vector<2x8xf32>
    %38 = vector.shape_cast %37 : vector<2x8xf32> to vector<2x8x1xf32>
    %39 = tpu.reciprocal %38 : vector<2x8x1xf32> -> vector<2x8x1xf32>
    %40 = vector.broadcast %39 : vector<2x8x1xf32> to vector<2x8x8xf32>
    %41 = arith.mulf %36, %40 : vector<2x8x8xf32>
    "tpu.trace_start"() <{level = 10 : i32, message = "bqk,bkd->bqd"}> : () -> ()
    %cst_12 = arith.constant dense<0.000000e+00> : vector<2x8x8xf32>
    %42 = tpu.matmul %41, %30, %cst_12 {dimension_numbers = #tpu.dot_dimension_numbers<[2], [1], [1], [2], [0, 0, 0, 1, 1, 2], [0], [0]>} : vector<2x8x8xf32>, vector<2x8x8xf32>, vector<2x8x8xf32> -> vector<2x8x8xf32>
    "tpu.trace_stop"() : () -> ()
    %43 = vector.shape_cast %42 : vector<2x8x8xf32> to vector<16x8xf32>
    %44 = vector.extract_strided_slice %5 {offsets = [0, 16], sizes = [16, 8], strides = [1, 1]} : vector<16x96xf32> to vector<16x8xf32>
    %45 = vector.shape_cast %44 : vector<16x8xf32> to vector<2x8x8xf32>
    %46 = vector.extract_strided_slice %5 {offsets = [0, 48], sizes = [16, 8], strides = [1, 1]} : vector<16x96xf32> to vector<16x8xf32>
    %47 = vector.shape_cast %46 : vector<16x8xf32> to vector<2x8x8xf32>
    %48 = vector.extract_strided_slice %5 {offsets = [0, 80], sizes = [16, 8], strides = [1, 1]} : vector<16x96xf32> to vector<16x8xf32>
    %49 = vector.shape_cast %48 : vector<16x8xf32> to vector<2x8x8xf32>
    "tpu.trace_start"() <{level = 10 : i32, message = "bqd,bkd->bqk"}> : () -> ()
    %cst_13 = arith.constant dense<0.000000e+00> : vector<2x8x8xf32>
    %50 = tpu.matmul %45, %47, %cst_13 {dimension_numbers = #tpu.dot_dimension_numbers<[2], [2], [1], [1], [0, 0, 0, 1, 1, 1], [0], [0]>} : vector<2x8x8xf32>, vector<2x8x8xf32>, vector<2x8x8xf32> -> vector<2x8x8xf32>
    "tpu.trace_stop"() : () -> ()
    %cst_14 = arith.constant dense<0xFF800000> : vector<2x8xf32>
    %51 = vector.multi_reduction <maximumf>, %50, %cst_14 [2] : vector<2x8x8xf32> to vector<2x8xf32>
    %52 = vector.shape_cast %51 : vector<2x8xf32> to vector<2x8x1xf32>
    %53 = vector.broadcast %52 : vector<2x8x1xf32> to vector<2x8x8xf32>
    %54 = arith.subf %50, %53 : vector<2x8x8xf32>
    %55 = math.exp %54 : vector<2x8x8xf32>
    %cst_15 = arith.constant dense<0.000000e+00> : vector<2x8xf32>
    %56 = vector.multi_reduction <add>, %55, %cst_15 [2] : vector<2x8x8xf32> to vector<2x8xf32>
    %57 = vector.shape_cast %56 : vector<2x8xf32> to vector<2x8x1xf32>
    %58 = tpu.reciprocal %57 : vector<2x8x1xf32> -> vector<2x8x1xf32>
    %59 = vector.broadcast %58 : vector<2x8x1xf32> to vector<2x8x8xf32>
    %60 = arith.mulf %55, %59 : vector<2x8x8xf32>
    "tpu.trace_start"() <{level = 10 : i32, message = "bqk,bkd->bqd"}> : () -> ()
    %cst_16 = arith.constant dense<0.000000e+00> : vector<2x8x8xf32>
    %61 = tpu.matmul %60, %49, %cst_16 {dimension_numbers = #tpu.dot_dimension_numbers<[2], [1], [1], [2], [0, 0, 0, 1, 1, 2], [0], [0]>} : vector<2x8x8xf32>, vector<2x8x8xf32>, vector<2x8x8xf32> -> vector<2x8x8xf32>
    "tpu.trace_stop"() : () -> ()
    %62 = vector.shape_cast %61 : vector<2x8x8xf32> to vector<16x8xf32>
    %63 = vector.extract_strided_slice %5 {offsets = [0, 24], sizes = [16, 8], strides = [1, 1]} : vector<16x96xf32> to vector<16x8xf32>
    %64 = vector.shape_cast %63 : vector<16x8xf32> to vector<2x8x8xf32>
    %65 = vector.extract_strided_slice %5 {offsets = [0, 56], sizes = [16, 8], strides = [1, 1]} : vector<16x96xf32> to vector<16x8xf32>
    %66 = vector.shape_cast %65 : vector<16x8xf32> to vector<2x8x8xf32>
    %67 = vector.extract_strided_slice %5 {offsets = [0, 88], sizes = [16, 8], strides = [1, 1]} : vector<16x96xf32> to vector<16x8xf32>
    %68 = vector.shape_cast %67 : vector<16x8xf32> to vector<2x8x8xf32>
    "tpu.trace_start"() <{level = 10 : i32, message = "bqd,bkd->bqk"}> : () -> ()
    %cst_17 = arith.constant dense<0.000000e+00> : vector<2x8x8xf32>
    %69 = tpu.matmul %64, %66, %cst_17 {dimension_numbers = #tpu.dot_dimension_numbers<[2], [2], [1], [1], [0, 0, 0, 1, 1, 1], [0], [0]>} : vector<2x8x8xf32>, vector<2x8x8xf32>, vector<2x8x8xf32> -> vector<2x8x8xf32>
    "tpu.trace_stop"() : () -> ()
    %cst_18 = arith.constant dense<0xFF800000> : vector<2x8xf32>
    %70 = vector.multi_reduction <maximumf>, %69, %cst_18 [2] : vector<2x8x8xf32> to vector<2x8xf32>
    %71 = vector.shape_cast %70 : vector<2x8xf32> to vector<2x8x1xf32>
    %72 = vector.broadcast %71 : vector<2x8x1xf32> to vector<2x8x8xf32>
    %73 = arith.subf %69, %72 : vector<2x8x8xf32>
    %74 = math.exp %73 : vector<2x8x8xf32>
    %cst_19 = arith.constant dense<0.000000e+00> : vector<2x8xf32>
    %75 = vector.multi_reduction <add>, %74, %cst_19 [2] : vector<2x8x8xf32> to vector<2x8xf32>
    %76 = vector.shape_cast %75 : vector<2x8xf32> to vector<2x8x1xf32>
    %77 = tpu.reciprocal %76 : vector<2x8x1xf32> -> vector<2x8x1xf32>
    %78 = vector.broadcast %77 : vector<2x8x1xf32> to vector<2x8x8xf32>
    %79 = arith.mulf %74, %78 : vector<2x8x8xf32>
    "tpu.trace_start"() <{level = 10 : i32, message = "bqk,bkd->bqd"}> : () -> ()
    %cst_20 = arith.constant dense<0.000000e+00> : vector<2x8x8xf32>
    %80 = tpu.matmul %79, %68, %cst_20 {dimension_numbers = #tpu.dot_dimension_numbers<[2], [1], [1], [2], [0, 0, 0, 1, 1, 2], [0], [0]>} : vector<2x8x8xf32>, vector<2x8x8xf32>, vector<2x8x8xf32> -> vector<2x8x8xf32>
    "tpu.trace_stop"() : () -> ()
    %81 = vector.shape_cast %80 : vector<2x8x8xf32> to vector<16x8xf32>
    %82 = tpu.concatenate %24, %43, %62, %81 in 1 : vector<16x8xf32>, vector<16x8xf32>, vector<16x8xf32>, vector<16x8xf32> -> vector<16x32xf32>
    %c0_21 = arith.constant 0 : index
    %c0_22 = arith.constant 0 : index
    %83 = vector.load %arg4[%c0_21, %c0_22] : memref<32x32xf32, #tpu.memory_space<vmem>>, vector<32x32xf32>
    %cst_23 = arith.constant dense<0.000000e+00> : vector<16x32xf32>
    %84 = tpu.matmul %82, %83, %cst_23 {dimension_numbers = #tpu.dot_dimension_numbers<[1], [0], [0], [1], [0, 0, 1, 1], [], []>} : vector<16x32xf32>, vector<32x32xf32>, vector<16x32xf32> -> vector<16x32xf32>
    %c0_24 = arith.constant 0 : index
    %c0_25 = arith.constant 0 : index
    %85 = vector.load %arg5[%c0_24, %c0_25] : memref<1x32xf32, #tpu.memory_space<vmem>>, vector<1x32xf32>
    %86 = vector.broadcast %85 : vector<1x32xf32> to vector<16x32xf32>
    %87 = arith.addf %84, %86 : vector<16x32xf32>
    %88 = arith.addf %0, %87 : vector<16x32xf32>
    %cst_26 = arith.constant dense<0.000000e+00> : vector<16xf32>
    %89 = vector.multi_reduction <add>, %88, %cst_26 [1] : vector<16x32xf32> to vector<16xf32>
    %90 = vector.shape_cast %89 : vector<16xf32> to vector<16x1xf32>
    %cst_27 = arith.constant 3.200000e+01 : f32
    %91 = vector.broadcast %cst_27 : f32 to vector<16x1xf32>
    %92 = arith.divf %90, %91 : vector<16x1xf32>
    %93 = vector.broadcast %92 : vector<16x1xf32> to vector<16x32xf32>
    %94 = arith.subf %88, %93 : vector<16x32xf32>
    %95 = arith.mulf %94, %94 : vector<16x32xf32>
    %cst_28 = arith.constant dense<0.000000e+00> : vector<16xf32>
    %96 = vector.multi_reduction <add>, %95, %cst_28 [1] : vector<16x32xf32> to vector<16xf32>
    %97 = vector.shape_cast %96 : vector<16xf32> to vector<16x1xf32>
    %cst_29 = arith.constant 3.200000e+01 : f32
    %98 = vector.broadcast %cst_29 : f32 to vector<16x1xf32>
    %99 = arith.divf %97, %98 : vector<16x1xf32>
    %100 = vector.broadcast %92 : vector<16x1xf32> to vector<16x32xf32>
    %101 = arith.subf %88, %100 : vector<16x32xf32>
    %cst_30 = arith.constant 9.99999974E-6 : f32
    %102 = vector.broadcast %cst_30 : f32 to vector<16x1xf32>
    %103 = arith.addf %99, %102 : vector<16x1xf32>
    %104 = math.rsqrt %103 : vector<16x1xf32>
    %105 = vector.broadcast %104 : vector<16x1xf32> to vector<16x32xf32>
    %106 = arith.mulf %101, %105 : vector<16x32xf32>
    %c0_31 = arith.constant 0 : index
    %c0_32 = arith.constant 0 : index
    %107 = vector.load %arg6[%c0_31, %c0_32] : memref<1x32xf32, #tpu.memory_space<vmem>>, vector<1x32xf32>
    %108 = vector.broadcast %107 : vector<1x32xf32> to vector<16x32xf32>
    %109 = arith.mulf %106, %108 : vector<16x32xf32>
    %c0_33 = arith.constant 0 : index
    %c0_34 = arith.constant 0 : index
    %110 = vector.load %arg7[%c0_33, %c0_34] : memref<1x32xf32, #tpu.memory_space<vmem>>, vector<1x32xf32>
    %111 = vector.broadcast %110 : vector<1x32xf32> to vector<16x32xf32>
    %112 = arith.addf %109, %111 : vector<16x32xf32>
    %c0_35 = arith.constant 0 : index
    %c0_36 = arith.constant 0 : index
    %113 = vector.load %arg8[%c0_35, %c0_36] : memref<32x64xf32, #tpu.memory_space<vmem>>, vector<32x64xf32>
    %cst_37 = arith.constant dense<0.000000e+00> : vector<16x64xf32>
    %114 = tpu.matmul %112, %113, %cst_37 {dimension_numbers = #tpu.dot_dimension_numbers<[1], [0], [0], [1], [0, 0, 1, 1], [], []>} : vector<16x32xf32>, vector<32x64xf32>, vector<16x64xf32> -> vector<16x64xf32>
    %c0_38 = arith.constant 0 : index
    %c0_39 = arith.constant 0 : index
    %115 = vector.load %arg9[%c0_38, %c0_39] : memref<1x64xf32, #tpu.memory_space<vmem>>, vector<1x64xf32>
    %116 = vector.broadcast %115 : vector<1x64xf32> to vector<16x64xf32>
    %117 = arith.addf %114, %116 : vector<16x64xf32>
    %cst_40 = arith.constant 0.000000e+00 : f32
    %118 = vector.broadcast %cst_40 : f32 to vector<16x64xf32>
    %119 = arith.maximumf %117, %118 : vector<16x64xf32>
    %c0_41 = arith.constant 0 : index
    %c0_42 = arith.constant 0 : index
    %120 = vector.load %arg10[%c0_41, %c0_42] : memref<64x32xf32, #tpu.memory_space<vmem>>, vector<64x32xf32>
    %cst_43 = arith.constant dense<0.000000e+00> : vector<16x32xf32>
    %121 = tpu.matmul %119, %120, %cst_43 {dimension_numbers = #tpu.dot_dimension_numbers<[1], [0], [0], [1], [0, 0, 1, 1], [], []>} : vector<16x64xf32>, vector<64x32xf32>, vector<16x32xf32> -> vector<16x32xf32>
    %c0_44 = arith.constant 0 : index
    %c0_45 = arith.constant 0 : index
    %122 = vector.load %arg11[%c0_44, %c0_45] : memref<1x32xf32, #tpu.memory_space<vmem>>, vector<1x32xf32>
    %123 = vector.broadcast %122 : vector<1x32xf32> to vector<16x32xf32>
    %124 = arith.addf %121, %123 : vector<16x32xf32>
    %c0_46 = arith.constant 0 : index
    %c0_47 = arith.constant 0 : index
    %125 = vector.load %arg15[%c0_46, %c0_47] : memref<16x32xf32, #tpu.memory_space<vmem>>, vector<16x32xf32>
    tpu.vector_store %arg15[%c0_46, %c0_47], %124 {strides = array<i32>} : memref<16x32xf32, #tpu.memory_space<vmem>>, vector<16x32xf32>,
    %126 = arith.addf %112, %124 : vector<16x32xf32>
    %cst_48 = arith.constant dense<0.000000e+00> : vector<16xf32>
    %127 = vector.multi_reduction <add>, %126, %cst_48 [1] : vector<16x32xf32> to vector<16xf32>
    %128 = vector.shape_cast %127 : vector<16xf32> to vector<16x1xf32>
    %cst_49 = arith.constant 3.200000e+01 : f32
    %129 = vector.broadcast %cst_49 : f32 to vector<16x1xf32>
    %130 = arith.divf %128, %129 : vector<16x1xf32>
    %131 = vector.broadcast %130 : vector<16x1xf32> to vector<16x32xf32>
    %132 = arith.subf %126, %131 : vector<16x32xf32>
    %133 = arith.mulf %132, %132 : vector<16x32xf32>
    %cst_50 = arith.constant dense<0.000000e+00> : vector<16xf32>
    %134 = vector.multi_reduction <add>, %133, %cst_50 [1] : vector<16x32xf32> to vector<16xf32>
    %135 = vector.shape_cast %134 : vector<16xf32> to vector<16x1xf32>
    %cst_51 = arith.constant 3.200000e+01 : f32
    %136 = vector.broadcast %cst_51 : f32 to vector<16x1xf32>
    %137 = arith.divf %135, %136 : vector<16x1xf32>
    %138 = vector.broadcast %130 : vector<16x1xf32> to vector<16x32xf32>
    %139 = arith.subf %126, %138 : vector<16x32xf32>
    %cst_52 = arith.constant 9.99999974E-6 : f32
    %140 = vector.broadcast %cst_52 : f32 to vector<16x1xf32>
    %141 = arith.addf %137, %140 : vector<16x1xf32>
    %142 = math.rsqrt %141 : vector<16x1xf32>
    %143 = vector.broadcast %142 : vector<16x1xf32> to vector<16x32xf32>
    %144 = arith.mulf %139, %143 : vector<16x32xf32>
    %c0_53 = arith.constant 0 : index
    %c0_54 = arith.constant 0 : index
    %145 = vector.load %arg12[%c0_53, %c0_54] : memref<1x32xf32, #tpu.memory_space<vmem>>, vector<1x32xf32>
    %146 = vector.broadcast %145 : vector<1x32xf32> to vector<16x32xf32>
    %147 = arith.mulf %144, %146 : vector<16x32xf32>
    %c0_55 = arith.constant 0 : index
    %c0_56 = arith.constant 0 : index
    %148 = vector.load %arg13[%c0_55, %c0_56] : memref<1x32xf32, #tpu.memory_space<vmem>>, vector<1x32xf32>
    %149 = vector.broadcast %148 : vector<1x32xf32> to vector<16x32xf32>
    %150 = arith.addf %147, %149 : vector<16x32xf32>
    %c0_57 = arith.constant 0 : index
    %c0_58 = arith.constant 0 : index
    %151 = vector.load %arg14[%c0_57, %c0_58] : memref<16x32xf32, #tpu.memory_space<vmem>>, vector<16x32xf32>
    tpu.vector_store %arg14[%c0_57, %c0_58], %150 {strides = array<i32>} : memref<16x32xf32, #tpu.memory_space<vmem>>, vector<16x32xf32>,
    return
  }
  func.func @transform_0(%arg0: i32) -> (i32, i32) {
    %c0_i32 = arith.constant 0 : i32
    %c0_i32_0 = arith.constant 0 : i32
    %c0_i32_1 = arith.constant 0 : i32
    return %c0_i32, %c0_i32_0 : i32, i32
  }
  func.func @transform_1(%arg0: i32) -> (i32, i32) {
    %c0_i32 = arith.constant 0 : i32
    %c0_i32_0 = arith.constant 0 : i32
    %c0_i32_1 = arith.constant 0 : i32
    return %c0_i32, %c0_i32_0 : i32, i32
  }
  func.func @transform_2(%arg0: i32) -> (i32, i32) {
    %c0_i32 = arith.constant 0 : i32
    %c0_i32_0 = arith.constant 0 : i32
    %c0_i32_1 = arith.constant 0 : i32
    return %c0_i32, %c0_i32_0 : i32, i32
  }
  func.func @transform_3(%arg0: i32) -> (i32, i32) {
    %c0_i32 = arith.constant 0 : i32
    %c0_i32_0 = arith.constant 0 : i32
    %c0_i32_1 = arith.constant 0 : i32
    return %c0_i32, %c0_i32_0 : i32, i32
  }
  func.func @transform_4(%arg0: i32) -> (i32, i32) {
    %c0_i32 = arith.constant 0 : i32
    %c0_i32_0 = arith.constant 0 : i32
    %c0_i32_1 = arith.constant 0 : i32
    return %c0_i32, %c0_i32_0 : i32, i32
  }
  func.func @transform_5(%arg0: i32) -> (i32, i32) {
    %c0_i32 = arith.constant 0 : i32
    %c0_i32_0 = arith.constant 0 : i32
    %c0_i32_1 = arith.constant 0 : i32
    return %c0_i32, %c0_i32_0 : i32, i32
  }
  func.func @transform_6(%arg0: i32) -> (i32, i32) {
    %c0_i32 = arith.constant 0 : i32
    %c0_i32_0 = arith.constant 0 : i32
    %c0_i32_1 = arith.constant 0 : i32
    return %c0_i32, %c0_i32_0 : i32, i32
  }
  func.func @transform_7(%arg0: i32) -> (i32, i32) {
    %c0_i32 = arith.constant 0 : i32
    %c0_i32_0 = arith.constant 0 : i32
    %c0_i32_1 = arith.constant 0 : i32
    return %c0_i32, %c0_i32_0 : i32, i32
  }
  func.func @transform_8(%arg0: i32) -> (i32, i32) {
    %c0_i32 = arith.constant 0 : i32
    %c0_i32_0 = arith.constant 0 : i32
    %c0_i32_1 = arith.constant 0 : i32
    return %c0_i32, %c0_i32_0 : i32, i32
  }
  func.func @transform_9(%arg0: i32) -> (i32, i32) {
    %c0_i32 = arith.constant 0 : i32
    %c0_i32_0 = arith.constant 0 : i32
    %c0_i32_1 = arith.constant 0 : i32
    return %c0_i32, %c0_i32_0 : i32, i32
  }
  func.func @transform_10(%arg0: i32) -> (i32, i32) {
    %c0_i32 = arith.constant 0 : i32
    %c0_i32_0 = arith.constant 0 : i32
    %c0_i32_1 = arith.constant 0 : i32
    return %c0_i32, %c0_i32_0 : i32, i32
  }
  func.func @transform_11(%arg0: i32) -> (i32, i32) {
    %c0_i32 = arith.constant 0 : i32
    %c0_i32_0 = arith.constant 0 : i32
    %c0_i32_1 = arith.constant 0 : i32
    return %c0_i32, %c0_i32_0 : i32, i32
  }
  func.func @transform_12(%arg0: i32) -> (i32, i32) {
    %c0_i32 = arith.constant 0 : i32
    %c0_i32_0 = arith.constant 0 : i32
    %c0_i32_1 = arith.constant 0 : i32
    return %c0_i32, %c0_i32_0 : i32, i32
  }
  func.func @transform_13(%arg0: i32) -> (i32, i32) {
    %c0_i32 = arith.constant 0 : i32
    %c0_i32_0 = arith.constant 0 : i32
    %c0_i32_1 = arith.constant 0 : i32
    return %c0_i32, %c0_i32_0 : i32, i32
  }
  func.func @transform_14(%arg0: i32) -> (i32, i32) {
    %c0_i32 = arith.constant 0 : i32
    %c0_i32_0 = arith.constant 0 : i32
    %c0_i32_1 = arith.constant 0 : i32
    return %c0_i32, %c0_i32_0 : i32, i32
  }
}

</mosaic_0001>

<llo_original>
// kernel: tpu_custom_call.1
$region0: #{tpu_custom_call.1}
  #allocation0 [shape = 'u32[]', space=smem, size = 0x4, offset = 0x4, fixed_abs, tag = 'smem constant byte address 0x4 - core index']
  #allocation1 [shape = 'u32[72,128]{1,0:T(1,128)}', space=vmem, size = 0x9000, scoped, tag = 'internal scratch']
  %s0 = inlined_call_operand.hbm [shape: f32[16,32], index: 0, kind: input, shape index: {}]
  %s1 = inlined_call_operand.vmem [shape: f32[32,96], index: 1, kind: input, shape index: {}]
  %s2 = inlined_call_operand.vmem [shape: f32[1,96], index: 2, kind: input, shape index: {}]
  %s3 = inlined_call_operand.vmem [shape: f32[32,32], index: 3, kind: input, shape index: {}]
  %s4 = inlined_call_operand.vmem [shape: f32[1,32], index: 4, kind: input, shape index: {}]
  %s5 = inlined_call_operand.vmem [shape: f32[1,32], index: 5, kind: input, shape index: {}]
  %s6 = inlined_call_operand.vmem [shape: f32[1,32], index: 6, kind: input, shape index: {}]
  %s7 = inlined_call_operand.vmem [shape: f32[32,64], index: 7, kind: input, shape index: {}]
  %s8 = inlined_call_operand.vmem [shape: f32[1,64], index: 8, kind: input, shape index: {}]
  %s9 = inlined_call_operand.vmem [shape: f32[64,32], index: 9, kind: input, shape index: {}]
  %s10 = inlined_call_operand.vmem [shape: f32[1,32], index: 10, kind: input, shape index: {}]
  %s11 = inlined_call_operand.vmem [shape: f32[1,32], index: 11, kind: input, shape index: {}]
  %s12 = inlined_call_operand.vmem [shape: f32[1,32], index: 12, kind: input, shape index: {}]
  %s13 = inlined_call_operand.hbm [shape: f32[16,32], index: 13, kind: output, shape index: {0}]
  %s14 = inlined_call_operand.hbm [shape: f32[16,32], index: 14, kind: output, shape index: {1}]
  %15 = xla_tuple %s13, %s14
  %s16 = sld [smem:[#allocation0]]
  $region74: #{tpu_custom_call.1} parent=0
    _
  %s18 = ssub.s32 1, %s16
  %s19 = scalar_select 0, %s18, %s16
  $region1: #{tpu_custom_call.1} parent=0
    #allocation2 [shape = 'u8[8192]{0}', space=vmem, size = 0x2000, scoped, tag = 'input window, operand 0, single buffered']
    #allocation3 [shape = 's32[1]{0}', space=sflag, size = 0x4, scoped, tag = 'scoped memory for tpu_custom_call.1']
    #allocation4 [shape = 's32[1]{0}', space=sflag, size = 0x4, scoped, tag = 'scoped memory for tpu_custom_call.1']
    #allocation5 [shape = 'u8[8192]{0}', space=vmem, size = 0x2000, scoped, tag = 'output window, operand 0, single buffered']
    #allocation6 [shape = 'u8[8192]{0}', space=vmem, size = 0x2000, scoped, tag = 'output window, operand 1, single buffered']
    #allocation7 [shape = 's32[1]{0}', space=sflag, size = 0x4, scoped, tag = 'scoped memory for tpu_custom_call.1']
    %20 = vsyncpa [#allocation3], 0
    %21 = vsyncpa [#allocation4], 0
    %22 = vsyncpa [#allocation7], 0
    // Predicated region
    $region2: #{tpu_custom_call.1} parent=1 // pred_check
      _
    $region3: #{tpu_custom_call.1} parent=1 // pred_check_branch
      %24 = sbr.rel (0) target = $region5
    $region4: #{tpu_custom_call.1} parent=1 // pred_region
      %26 = vsyncadd [#allocation3], 0
      %s27 = sshll.u32 %s0, 4
      %s28 = int_to_ptr.hbm [resolvable:$true] %s27
      %s29 = sshll.u32 [#allocation2], 4
      %s30 = int_to_ptr.vmem [resolvable:$true] %s29
      %35 = dma.hbm_to_vmem [thread:$0]  %s28, 256, %s30, [#allocation3], 128, 128, 8
    $region5: #{tpu_custom_call.1} parent=1 // pred_fallthru
      _
    // Predicated region
    $region6: #{tpu_custom_call.1} parent=1 // pred_check
      _
    $region7: #{tpu_custom_call.1} parent=1 // pred_check_branch
      %37 = sbr.rel (0) target = $region9
    $region8: #{tpu_custom_call.1} parent=1 // pred_region
      _
    $region9: #{tpu_custom_call.1} parent=1 // pred_fallthru
      _
    // Predicated region
    $region10: #{tpu_custom_call.1} parent=1 // pred_check
      _
    $region11: #{tpu_custom_call.1} parent=1 // pred_check_branch
      %39 = sbr.rel (0) target = $region13
    $region12: #{tpu_custom_call.1} parent=1 // pred_region
      _
    $region13: #{tpu_custom_call.1} parent=1 // pred_fallthru
      _
    // Predicated region
    $region14: #{tpu_custom_call.1} parent=1 // pred_check
      _
    $region15: #{tpu_custom_call.1} parent=1 // pred_check_branch
      %41 = sbr.rel (0) target = $region17
    $region16: #{tpu_custom_call.1} parent=1 // pred_region
      _
    $region17: #{tpu_custom_call.1} parent=1 // pred_fallthru
      _
    // Predicated region
    $region18: #{tpu_custom_call.1} parent=1 // pred_check
      _
    $region19: #{tpu_custom_call.1} parent=1 // pred_check_branch
      %43 = sbr.rel (0) target = $region21
    $region20: #{tpu_custom_call.1} parent=1 // pred_region
      _
    $region21: #{tpu_custom_call.1} parent=1 // pred_fallthru
      _
    // Predicated region
    $region22: #{tpu_custom_call.1} parent=1 // pred_check
      _
    $region23: #{tpu_custom_call.1} parent=1 // pred_check_branch
      %45 = sbr.rel (0) target = $region25
    $region24: #{tpu_custom_call.1} parent=1 // pred_region
      _
    $region25: #{tpu_custom_call.1} parent=1 // pred_fallthru
      _
    // Predicated region
    $region26: #{tpu_custom_call.1} parent=1 // pred_check
      _
    $region27: #{tpu_custom_call.1} parent=1 // pred_check_branch
      %47 = sbr.rel (0) target = $region29
    $region28: #{tpu_custom_call.1} parent=1 // pred_region
      _
    $region29: #{tpu_custom_call.1} parent=1 // pred_fallthru
      _
    // Predicated region
    $region30: #{tpu_custom_call.1} parent=1 // pred_check
      _
    $region31: #{tpu_custom_call.1} parent=1 // pred_check_branch
      %49 = sbr.rel (0) target = $region33
    $region32: #{tpu_custom_call.1} parent=1 // pred_region
      _
    $region33: #{tpu_custom_call.1} parent=1 // pred_fallthru
      _
    // Predicated region
    $region34: #{tpu_custom_call.1} parent=1 // pred_check
      _
    $region35: #{tpu_custom_call.1} parent=1 // pred_check_branch
      %51 = sbr.rel (0) target = $region37
    $region36: #{tpu_custom_call.1} parent=1 // pred_region
      _
    $region37: #{tpu_custom_call.1} parent=1 // pred_fallthru
      _
    // Predicated region
    $region38: #{tpu_custom_call.1} parent=1 // pred_check
      _
    $region39: #{tpu_custom_call.1} parent=1 // pred_check_branch
      %53 = sbr.rel (0) target = $region41
    $region40: #{tpu_custom_call.1} parent=1 // pred_region
      _
    $region41: #{tpu_custom_call.1} parent=1 // pred_fallthru
      _
    // Predicated region
    $region42: #{tpu_custom_call.1} parent=1 // pred_check
      _
    $region43: #{tpu_custom_call.1} parent=1 // pred_check_branch
      %55 = sbr.rel (0) target = $region45
    $region44: #{tpu_custom_call.1} parent=1 // pred_region
      _
    $region45: #{tpu_custom_call.1} parent=1 // pred_fallthru
      _
    // Predicated region
    $region46: #{tpu_custom_call.1} parent=1 // pred_check
      _
    $region47: #{tpu_custom_call.1} parent=1 // pred_check_branch
      %57 = sbr.rel (0) target = $region49
    $region48: #{tpu_custom_call.1} parent=1 // pred_region
      _
    $region49: #{tpu_custom_call.1} parent=1 // pred_fallthru
      _
    // Predicated region
    $region50: #{tpu_custom_call.1} parent=1 // pred_check
      _
    $region51: #{tpu_custom_call.1} parent=1 // pred_check_branch
      %59 = sbr.rel (0) target = $region53
    $region52: #{tpu_custom_call.1} parent=1 // pred_region
      _
    $region53: #{tpu_custom_call.1} parent=1 // pred_fallthru
      _
    // Predicated region
    $region54: #{tpu_custom_call.1} parent=1 // pred_check
      _
    $region55: #{tpu_custom_call.1} parent=1 // pred_check_branch
      %61 = sbr.rel (0) target = $region57
    $region56: #{tpu_custom_call.1} parent=1 // pred_region
      %63 = dma.done [#allocation3], 256
    $region57: #{tpu_custom_call.1} parent=1 // pred_fallthru
      _
    %v64 = vld [vmem:[#allocation2] sm:$0xff]
    %v65 = vld [vmem:[#allocation2 + $0x8] sm:$0xff]
    %v66 = vld [vmem:[%s1] sm:$0xff]
    %v67 = vld [vmem:[%s1 + $0x8] sm:$0xff]
    %v68 = vld [vmem:[%s1 + $0x10] sm:$0xff]
    %v69 = vld [vmem:[%s1 + $0x18] sm:$0xff]
    %v70 = vld [vmem:[%s2] sm:$0x1]
    %v72 = vperm.slane %v70, 0
    %vm74 = vcmask 261120
    %v76 = vsel %vm74, %v64, 0
    %v79 = vsel %vm74, %v65, 0
    %81 = vmatpush.msra.mxu0 0.0
    %82 = vmatpush.msra.mxu0 0.0
    %83 = vmatpush.msra.mxu0 0.0
    %84 = vmatpush.msra.mxu0 0.0
    %85 = vmatpush.msra.mxu0 0.0
    %86 = vmatpush.msra.mxu0 0.0
    %87 = vmatpush.msra.mxu0 0.0
    %88 = vmatpush.msra.mxu0 0.0
    %89 = vmatpush.msra.mxu0 0.0
    %90 = vmatpush.msra.mxu0 0.0
    %91 = vmatpush.msra.mxu0 0.0
    %92 = vmatpush.msra.mxu0 0.0
    %93 = vmatpush.msra.mxu0 %v69
    %94 = vmatpush.msra.mxu0 %v68
    %95 = vmatpush.msra.mxu0 %v67
    %96 = vmatpush.msra.mxu0 %v66
    %97 = vmatmul.f32.gmra.mxu0 %v76
    %v98 = vpop.f32.mrf.mxu0
    %v99 = vadd.f32 %v72, %v98
    %100 = vmatmul.f32.gmra.mxu0 %v79
    %v101 = vpop.f32.mrf.mxu0
    %v102 = vadd.f32 %v72, %v101
    %103 = vdwg.mxu0
    %105 = vrot.lane.b32.xlu0 %v99, 96
    %v106 = vpop.permute.xlu0 %105
    %vm107 = vcmask 64512
    %v108 = vsel %vm107, %v99, 0
    %v110 = vsel %vm107, %v106, 0
    %112 = vmatpush.xpose.msra.mxu0 0.0
    %113 = vmatpush.xpose.msra.mxu0 0.0
    %114 = vmatpush.xpose.msra.mxu0 0.0
    %115 = vmatpush.xpose.msra.mxu0 0.0
    %116 = vmatpush.xpose.msra.mxu0 0.0
    %117 = vmatpush.xpose.msra.mxu0 0.0
    %118 = vmatpush.xpose.msra.mxu0 0.0
    %119 = vmatpush.xpose.msra.mxu0 0.0
    %120 = vmatpush.xpose.msra.mxu0 0.0
    %121 = vmatpush.xpose.msra.mxu0 0.0
    %122 = vmatpush.xpose.msra.mxu0 0.0
    %123 = vmatpush.xpose.msra.mxu0 0.0
    %124 = vmatpush.xpose.msra.mxu0 0.0
    %125 = vmatpush.xpose.msra.mxu0 0.0
    %126 = vmatpush.xpose.msra.mxu0 0.0
    %127 = vmatpush.xpose.msra.mxu0 %v110
    %128 = vmatmul.f32.gmra.mxu0 %v108
    %v129 = vpop.f32.mrf.mxu0
    %v130 = vadd.f32 0.0, %v129
    %131 = vdwg.mxu0
    %133 = vrot.lane.b32.xlu0 %v102, 96
    %v134 = vpop.permute.xlu0 %133
    %v135 = vsel %vm107, %v102, 0
    %v137 = vsel %vm107, %v134, 0
    %139 = vmatpush.xpose.msra.mxu0 0.0
    %140 = vmatpush.xpose.msra.mxu0 0.0
    %141 = vmatpush.xpose.msra.mxu0 0.0
    %142 = vmatpush.xpose.msra.mxu0 0.0
    %143 = vmatpush.xpose.msra.mxu0 0.0
    %144 = vmatpush.xpose.msra.mxu0 0.0
    %145 = vmatpush.xpose.msra.mxu0 0.0
    %146 = vmatpush.xpose.msra.mxu0 0.0
    %147 = vmatpush.xpose.msra.mxu0 0.0
    %148 = vmatpush.xpose.msra.mxu0 0.0
    %149 = vmatpush.xpose.msra.mxu0 0.0
    %150 = vmatpush.xpose.msra.mxu0 0.0
    %151 = vmatpush.xpose.msra.mxu0 0.0
    %152 = vmatpush.xpose.msra.mxu0 0.0
    %153 = vmatpush.xpose.msra.mxu0 0.0
    %154 = vmatpush.xpose.msra.mxu0 %v137
    %155 = vmatmul.f32.gmra.mxu0 %v135
    %v156 = vpop.f32.mrf.mxu0
    %v157 = vadd.f32 0.0, %v156
    %158 = vdwg.mxu0
    %v159 = vsel %vm107, %v130, -inf
    %160 = vmax.xlane.f32.xlu0 %v159
    %v161 = vpop.xlane.xlu0 %160
    %v162 = vsel %vm107, %v157, -inf
    %163 = vmax.xlane.f32.xlu0 %v162
    %v164 = vpop.xlane.xlu0 %163
    %v165 = vsub.f32 %v130, %v161
    %v166 = vsub.f32 %v157, %v164
    %v167 = vmul.f32 %v165, 1.442695
    %v168 = vpow.pop %v167
    %v169 = vmul.f32 %v166, 1.442695
    %v170 = vpow.pop %v169
    %v171 = vsel %vm107, %v168, 0.0
    %172 = vadd.xlane.f32.xlu0 %v171
    %v173 = vpop.xlane.xlu0 %172
    %v174 = vsel %vm107, %v170, 0.0
    %175 = vadd.xlane.f32.xlu0 %v174
    %v176 = vpop.xlane.xlu0 %175
    %v177 = vrcp.pop %v173
    %v178 = vmul.f32 %v173, %v177
    %v179 = vsub.f32 1.0, %v178
    %v180 = vmul.f32 %v177, %v179
    %v181 = vadd.f32 %v177, %v180
    %vm182 = vweird.f32 %v173
    %vm183 = vweird.f32 %v177
    %vm184 = vmor %vm182, %vm183
    %v185 = vsel %vm184, %v177, %v181
    %v186 = vand.u32 2147483647, %v173
    %vm187 = vcmp.eq.f32.partialorder %v186, 8.507059e+37
    %v188 = vand.u32 %v173, 2147483648
    %v189 = vor.u32 1.1754944e-38, %v188
    %v190 = vsel %vm187, %v189, %v185
    %v191 = vrcp.pop %v176
    %v192 = vmul.f32 %v176, %v191
    %v193 = vsub.f32 1.0, %v192
    %v194 = vmul.f32 %v191, %v193
    %v195 = vadd.f32 %v191, %v194
    %vm196 = vweird.f32 %v176
    %vm197 = vweird.f32 %v191
    %vm198 = vmor %vm196, %vm197
    %v199 = vsel %vm198, %v191, %v195
    %v200 = vand.u32 2147483647, %v176
    %vm201 = vcmp.eq.f32.partialorder %v200, 8.507059e+37
    %v202 = vand.u32 %v176, 2147483648
    %v203 = vor.u32 1.1754944e-38, %v202
    %v204 = vsel %vm201, %v203, %v199
    %v205 = vmul.f32 %v168, %v190
    %v206 = vmul.f32 %v170, %v204
    %207 = vrot.lane.b32.xlu0 %v99, 64
    %v208 = vpop.permute.xlu0 %207
    %v211 = vsel %vm107, %v205, 0
    %213 = vmatpush.msra.mxu0 0.0
    %214 = vmatpush.msra.mxu0 0.0
    %215 = vmatpush.msra.mxu0 0.0
    %216 = vmatpush.msra.mxu0 0.0
    %217 = vmatpush.msra.mxu0 0.0
    %218 = vmatpush.msra.mxu0 0.0
    %219 = vmatpush.msra.mxu0 0.0
    %220 = vmatpush.msra.mxu0 0.0
    %221 = vmatpush.msra.mxu0 0.0
    %222 = vmatpush.msra.mxu0 0.0
    %223 = vmatpush.msra.mxu0 0.0
    %224 = vmatpush.msra.mxu0 0.0
    %225 = vmatpush.msra.mxu0 0.0
    %226 = vmatpush.msra.mxu0 0.0
    %227 = vmatpush.msra.mxu0 0.0
    %228 = vmatpush.msra.mxu0 %v208
    %229 = vmatmul.f32.gmra.mxu0 %v211
    %v230 = vpop.f32.mrf.mxu0
    %v231 = vadd.f32 0.0, %v230
    %232 = vdwg.mxu0
    %233 = vrot.lane.b32.xlu0 %v102, 64
    %v234 = vpop.permute.xlu0 %233
    %v237 = vsel %vm107, %v206, 0
    %239 = vmatpush.msra.mxu0 0.0
    %240 = vmatpush.msra.mxu0 0.0
    %241 = vmatpush.msra.mxu0 0.0
    %242 = vmatpush.msra.mxu0 0.0
    %243 = vmatpush.msra.mxu0 0.0
    %244 = vmatpush.msra.mxu0 0.0
    %245 = vmatpush.msra.mxu0 0.0
    %246 = vmatpush.msra.mxu0 0.0
    %247 = vmatpush.msra.mxu0 0.0
    %248 = vmatpush.msra.mxu0 0.0
    %249 = vmatpush.msra.mxu0 0.0
    %250 = vmatpush.msra.mxu0 0.0
    %251 = vmatpush.msra.mxu0 0.0
    %252 = vmatpush.msra.mxu0 0.0
    %253 = vmatpush.msra.mxu0 0.0
    %254 = vmatpush.msra.mxu0 %v234
    %255 = vmatmul.f32.gmra.mxu0 %v237
    %v256 = vpop.f32.mrf.mxu0
    %v257 = vadd.f32 0.0, %v256
    %258 = vdwg.mxu0
    %259 = vrot.lane.b32.xlu0 %v99, 120
    %v260 = vpop.permute.xlu0 %259
    %261 = vrot.lane.b32.xlu0 %v99, 88
    %v262 = vpop.permute.xlu0 %261
    %v263 = vsel %vm107, %v260, 0
    %v265 = vsel %vm107, %v262, 0
    %267 = vmatpush.xpose.msra.mxu0 0.0
    %268 = vmatpush.xpose.msra.mxu0 0.0
    %269 = vmatpush.xpose.msra.mxu0 0.0
    %270 = vmatpush.xpose.msra.mxu0 0.0
    %271 = vmatpush.xpose.msra.mxu0 0.0
    %272 = vmatpush.xpose.msra.mxu0 0.0
    %273 = vmatpush.xpose.msra.mxu0 0.0
    %274 = vmatpush.xpose.msra.mxu0 0.0
    %275 = vmatpush.xpose.msra.mxu0 0.0
    %276 = vmatpush.xpose.msra.mxu0 0.0
    %277 = vmatpush.xpose.msra.mxu0 0.0
    %278 = vmatpush.xpose.msra.mxu0 0.0
    %279 = vmatpush.xpose.msra.mxu0 0.0
    %280 = vmatpush.xpose.msra.mxu0 0.0
    %281 = vmatpush.xpose.msra.mxu0 0.0
    %282 = vmatpush.xpose.msra.mxu0 %v265
    %283 = vmatmul.f32.gmra.mxu0 %v263
    %v284 = vpop.f32.mrf.mxu0
    %v285 = vadd.f32 0.0, %v284
    %286 = vdwg.mxu0
    %287 = vrot.lane.b32.xlu0 %v102, 120
    %v288 = vpop.permute.xlu0 %287
    %289 = vrot.lane.b32.xlu0 %v102, 88
    %v290 = vpop.permute.xlu0 %289
    %v291 = vsel %vm107, %v288, 0
    %v293 = vsel %vm107, %v290, 0
    %295 = vmatpush.xpose.msra.mxu0 0.0
    %296 = vmatpush.xpose.msra.mxu0 0.0
    %297 = vmatpush.xpose.msra.mxu0 0.0
    %298 = vmatpush.xpose.msra.mxu0 0.0
    %299 = vmatpush.xpose.msra.mxu0 0.0
    %300 = vmatpush.xpose.msra.mxu0 0.0
    %301 = vmatpush.xpose.msra.mxu0 0.0
    %302 = vmatpush.xpose.msra.mxu0 0.0
    %303 = vmatpush.xpose.msra.mxu0 0.0
    %304 = vmatpush.xpose.msra.mxu0 0.0
    %305 = vmatpush.xpose.msra.mxu0 0.0
    %306 = vmatpush.xpose.msra.mxu0 0.0
    %307 = vmatpush.xpose.msra.mxu0 0.0
    %308 = vmatpush.xpose.msra.mxu0 0.0
    %309 = vmatpush.xpose.msra.mxu0 0.0
    %310 = vmatpush.xpose.msra.mxu0 %v293
    %311 = vmatmul.f32.gmra.mxu0 %v291
    %v312 = vpop.f32.mrf.mxu0
    %v313 = vadd.f32 0.0, %v312
    %314 = vdwg.mxu0
    %v315 = vsel %vm107, %v285, -inf
    %316 = vmax.xlane.f32.xlu0 %v315
    %v317 = vpop.xlane.xlu0 %316
    %v318 = vsel %vm107, %v313, -inf
    %319 = vmax.xlane.f32.xlu0 %v318
    %v320 = vpop.xlane.xlu0 %319
    %v321 = vsub.f32 %v285, %v317
    %v322 = vsub.f32 %v313, %v320
    %v323 = vmul.f32 %v321, 1.442695
    %v324 = vpow.pop %v323
    %v325 = vmul.f32 %v322, 1.442695
    %v326 = vpow.pop %v325
    %v327 = vsel %vm107, %v324, 0.0
    %328 = vadd.xlane.f32.xlu0 %v327
    %v329 = vpop.xlane.xlu0 %328
    %v330 = vsel %vm107, %v326, 0.0
    %331 = vadd.xlane.f32.xlu0 %v330
    %v332 = vpop.xlane.xlu0 %331
    %v333 = vrcp.pop %v329
    %v334 = vmul.f32 %v329, %v333
    %v335 = vsub.f32 1.0, %v334
    %v336 = vmul.f32 %v333, %v335
    %v337 = vadd.f32 %v333, %v336
    %vm338 = vweird.f32 %v329
    %vm339 = vweird.f32 %v333
    %vm340 = vmor %vm338, %vm339
    %v341 = vsel %vm340, %v333, %v337
    %v342 = vand.u32 2147483647, %v329
    %vm343 = vcmp.eq.f32.partialorder %v342, 8.507059e+37
    %v344 = vand.u32 %v329, 2147483648
    %v345 = vor.u32 1.1754944e-38, %v344
    %v346 = vsel %vm343, %v345, %v341
    %v347 = vrcp.pop %v332
    %v348 = vmul.f32 %v332, %v347
    %v349 = vsub.f32 1.0, %v348
    %v350 = vmul.f32 %v347, %v349
    %v351 = vadd.f32 %v347, %v350
    %vm352 = vweird.f32 %v332
    %vm353 = vweird.f32 %v347
    %vm354 = vmor %vm352, %vm353
    %v355 = vsel %vm354, %v347, %v351
    %v356 = vand.u32 2147483647, %v332
    %vm357 = vcmp.eq.f32.partialorder %v356, 8.507059e+37
    %v358 = vand.u32 %v332, 2147483648
    %v359 = vor.u32 1.1754944e-38, %v358
    %v360 = vsel %vm357, %v359, %v355
    %v361 = vmul.f32 %v324, %v346
    %v362 = vmul.f32 %v326, %v360
    %363 = vrot.lane.b32.xlu0 %v99, 56
    %v364 = vpop.permute.xlu0 %363
    %v367 = vsel %vm107, %v361, 0
    %369 = vmatpush.msra.mxu0 0.0
    %370 = vmatpush.msra.mxu0 0.0
    %371 = vmatpush.msra.mxu0 0.0
    %372 = vmatpush.msra.mxu0 0.0
    %373 = vmatpush.msra.mxu0 0.0
    %374 = vmatpush.msra.mxu0 0.0
    %375 = vmatpush.msra.mxu0 0.0
    %376 = vmatpush.msra.mxu0 0.0
    %377 = vmatpush.msra.mxu0 0.0
    %378 = vmatpush.msra.mxu0 0.0
    %379 = vmatpush.msra.mxu0 0.0
    %380 = vmatpush.msra.mxu0 0.0
    %381 = vmatpush.msra.mxu0 0.0
    %382 = vmatpush.msra.mxu0 0.0
    %383 = vmatpush.msra.mxu0 0.0
    %384 = vmatpush.msra.mxu0 %v364
    %385 = vmatmul.f32.gmra.mxu0 %v367
    %v386 = vpop.f32.mrf.mxu0
    %v387 = vadd.f32 0.0, %v386
    %388 = vdwg.mxu0
    %389 = vrot.lane.b32.xlu0 %v102, 56
    %v390 = vpop.permute.xlu0 %389
    %v393 = vsel %vm107, %v362, 0
    %395 = vmatpush.msra.mxu0 0.0
    %396 = vmatpush.msra.mxu0 0.0
    %397 = vmatpush.msra.mxu0 0.0
    %398 = vmatpush.msra.mxu0 0.0
    %399 = vmatpush.msra.mxu0 0.0
    %400 = vmatpush.msra.mxu0 0.0
    %401 = vmatpush.msra.mxu0 0.0
    %402 = vmatpush.msra.mxu0 0.0
    %403 = vmatpush.msra.mxu0 0.0
    %404 = vmatpush.msra.mxu0 0.0
    %405 = vmatpush.msra.mxu0 0.0
    %406 = vmatpush.msra.mxu0 0.0
    %407 = vmatpush.msra.mxu0 0.0
    %408 = vmatpush.msra.mxu0 0.0
    %409 = vmatpush.msra.mxu0 0.0
    %410 = vmatpush.msra.mxu0 %v390
    %411 = vmatmul.f32.gmra.mxu0 %v393
    %v412 = vpop.f32.mrf.mxu0
    %v413 = vadd.f32 0.0, %v412
    %414 = vdwg.mxu0
    %415 = vrot.lane.b32.xlu0 %v99, 112
    %v416 = vpop.permute.xlu0 %415
    %417 = vrot.lane.b32.xlu0 %v99, 80
    %v418 = vpop.permute.xlu0 %417
    %v419 = vsel %vm107, %v416, 0
    %v421 = vsel %vm107, %v418, 0
    %423 = vmatpush.xpose.msra.mxu0 0.0
    %424 = vmatpush.xpose.msra.mxu0 0.0
    %425 = vmatpush.xpose.msra.mxu0 0.0
    %426 = vmatpush.xpose.msra.mxu0 0.0
    %427 = vmatpush.xpose.msra.mxu0 0.0
    %428 = vmatpush.xpose.msra.mxu0 0.0
    %429 = vmatpush.xpose.msra.mxu0 0.0
    %430 = vmatpush.xpose.msra.mxu0 0.0
    %431 = vmatpush.xpose.msra.mxu0 0.0
    %432 = vmatpush.xpose.msra.mxu0 0.0
    %433 = vmatpush.xpose.msra.mxu0 0.0
    %434 = vmatpush.xpose.msra.mxu0 0.0
    %435 = vmatpush.xpose.msra.mxu0 0.0
    %436 = vmatpush.xpose.msra.mxu0 0.0
    %437 = vmatpush.xpose.msra.mxu0 0.0
    %438 = vmatpush.xpose.msra.mxu0 %v421
    %439 = vmatmul.f32.gmra.mxu0 %v419
    %v440 = vpop.f32.mrf.mxu0
    %v441 = vadd.f32 0.0, %v440
    %442 = vdwg.mxu0
    %443 = vrot.lane.b32.xlu0 %v102, 112
    %v444 = vpop.permute.xlu0 %443
    %445 = vrot.lane.b32.xlu0 %v102, 80
    %v446 = vpop.permute.xlu0 %445
    %v447 = vsel %vm107, %v444, 0
    %v449 = vsel %vm107, %v446, 0
    %451 = vmatpush.xpose.msra.mxu0 0.0
    %452 = vmatpush.xpose.msra.mxu0 0.0
    %453 = vmatpush.xpose.msra.mxu0 0.0
    %454 = vmatpush.xpose.msra.mxu0 0.0
    %455 = vmatpush.xpose.msra.mxu0 0.0
    %456 = vmatpush.xpose.msra.mxu0 0.0
    %457 = vmatpush.xpose.msra.mxu0 0.0
    %458 = vmatpush.xpose.msra.mxu0 0.0
    %459 = vmatpush.xpose.msra.mxu0 0.0
    %460 = vmatpush.xpose.msra.mxu0 0.0
    %461 = vmatpush.xpose.msra.mxu0 0.0
    %462 = vmatpush.xpose.msra.mxu0 0.0
    %463 = vmatpush.xpose.msra.mxu0 0.0
    %464 = vmatpush.xpose.msra.mxu0 0.0
    %465 = vmatpush.xpose.msra.mxu0 0.0
    %466 = vmatpush.xpose.msra.mxu0 %v449
    %467 = vmatmul.f32.gmra.mxu0 %v447
    %v468 = vpop.f32.mrf.mxu0
    %v469 = vadd.f32 0.0, %v468
    %470 = vdwg.mxu0
    %v471 = vsel %vm107, %v441, -inf
    %472 = vmax.xlane.f32.xlu0 %v471
    %v473 = vpop.xlane.xlu0 %472
    %v474 = vsel %vm107, %v469, -inf
    %475 = vmax.xlane.f32.xlu0 %v474
    %v476 = vpop.xlane.xlu0 %475
    %v477 = vsub.f32 %v441, %v473
    %v478 = vsub.f32 %v469, %v476
    %v479 = vmul.f32 %v477, 1.442695
    %v480 = vpow.pop %v479
    %v481 = vmul.f32 %v478, 1.442695
    %v482 = vpow.pop %v481
    %v483 = vsel %vm107, %v480, 0.0
    %484 = vadd.xlane.f32.xlu0 %v483
    %v485 = vpop.xlane.xlu0 %484
    %v486 = vsel %vm107, %v482, 0.0
    %487 = vadd.xlane.f32.xlu0 %v486
    %v488 = vpop.xlane.xlu0 %487
    %v489 = vrcp.pop %v485
    %v490 = vmul.f32 %v485, %v489
    %v491 = vsub.f32 1.0, %v490
    %v492 = vmul.f32 %v489, %v491
    %v493 = vadd.f32 %v489, %v492
    %vm494 = vweird.f32 %v485
    %vm495 = vweird.f32 %v489
    %vm496 = vmor %vm494, %vm495
    %v497 = vsel %vm496, %v489, %v493
    %v498 = vand.u32 2147483647, %v485
    %vm499 = vcmp.eq.f32.partialorder %v498, 8.507059e+37
    %v500 = vand.u32 %v485, 2147483648
    %v501 = vor.u32 1.1754944e-38, %v500
    %v502 = vsel %vm499, %v501, %v497
    %v503 = vrcp.pop %v488
    %v504 = vmul.f32 %v488, %v503
    %v505 = vsub.f32 1.0, %v504
    %v506 = vmul.f32 %v503, %v505
    %v507 = vadd.f32 %v503, %v506
    %vm508 = vweird.f32 %v488
    %vm509 = vweird.f32 %v503
    %vm510 = vmor %vm508, %vm509
    %v511 = vsel %vm510, %v503, %v507
    %v512 = vand.u32 2147483647, %v488
    %vm513 = vcmp.eq.f32.partialorder %v512, 8.507059e+37
    %v514 = vand.u32 %v488, 2147483648
    %v515 = vor.u32 1.1754944e-38, %v514
    %v516 = vsel %vm513, %v515, %v511
    %v517 = vmul.f32 %v480, %v502
    %v518 = vmul.f32 %v482, %v516
    %519 = vrot.lane.b32.xlu0 %v99, 48
    %v520 = vpop.permute.xlu0 %519
    %v523 = vsel %vm107, %v517, 0
    %525 = vmatpush.msra.mxu0 0.0
    %526 = vmatpush.msra.mxu0 0.0
    %527 = vmatpush.msra.mxu0 0.0
    %528 = vmatpush.msra.mxu0 0.0
    %529 = vmatpush.msra.mxu0 0.0
    %530 = vmatpush.msra.mxu0 0.0
    %531 = vmatpush.msra.mxu0 0.0
    %532 = vmatpush.msra.mxu0 0.0
    %533 = vmatpush.msra.mxu0 0.0
    %534 = vmatpush.msra.mxu0 0.0
    %535 = vmatpush.msra.mxu0 0.0
    %536 = vmatpush.msra.mxu0 0.0
    %537 = vmatpush.msra.mxu0 0.0
    %538 = vmatpush.msra.mxu0 0.0
    %539 = vmatpush.msra.mxu0 0.0
    %540 = vmatpush.msra.mxu0 %v520
    %541 = vmatmul.f32.gmra.mxu0 %v523
    %v542 = vpop.f32.mrf.mxu0
    %v543 = vadd.f32 0.0, %v542
    %544 = vdwg.mxu0
    %545 = vrot.lane.b32.xlu0 %v102, 48
    %v546 = vpop.permute.xlu0 %545
    %v549 = vsel %vm107, %v518, 0
    %551 = vmatpush.msra.mxu0 0.0
    %552 = vmatpush.msra.mxu0 0.0
    %553 = vmatpush.msra.mxu0 0.0
    %554 = vmatpush.msra.mxu0 0.0
    %555 = vmatpush.msra.mxu0 0.0
    %556 = vmatpush.msra.mxu0 0.0
    %557 = vmatpush.msra.mxu0 0.0
    %558 = vmatpush.msra.mxu0 0.0
    %559 = vmatpush.msra.mxu0 0.0
    %560 = vmatpush.msra.mxu0 0.0
    %561 = vmatpush.msra.mxu0 0.0
    %562 = vmatpush.msra.mxu0 0.0
    %563 = vmatpush.msra.mxu0 0.0
    %564 = vmatpush.msra.mxu0 0.0
    %565 = vmatpush.msra.mxu0 0.0
    %566 = vmatpush.msra.mxu0 %v546
    %567 = vmatmul.f32.gmra.mxu0 %v549
    %v568 = vpop.f32.mrf.mxu0
    %v569 = vadd.f32 0.0, %v568
    %570 = vdwg.mxu0
    %571 = vrot.lane.b32.xlu0 %v99, 104
    %v572 = vpop.permute.xlu0 %571
    %573 = vrot.lane.b32.xlu0 %v99, 72
    %v574 = vpop.permute.xlu0 %573
    %v575 = vsel %vm107, %v572, 0
    %v577 = vsel %vm107, %v574, 0
    %579 = vmatpush.xpose.msra.mxu0 0.0
    %580 = vmatpush.xpose.msra.mxu0 0.0
    %581 = vmatpush.xpose.msra.mxu0 0.0
    %582 = vmatpush.xpose.msra.mxu0 0.0
    %583 = vmatpush.xpose.msra.mxu0 0.0
    %584 = vmatpush.xpose.msra.mxu0 0.0
    %585 = vmatpush.xpose.msra.mxu0 0.0
    %586 = vmatpush.xpose.msra.mxu0 0.0
    %587 = vmatpush.xpose.msra.mxu0 0.0
    %588 = vmatpush.xpose.msra.mxu0 0.0
    %589 = vmatpush.xpose.msra.mxu0 0.0
    %590 = vmatpush.xpose.msra.mxu0 0.0
    %591 = vmatpush.xpose.msra.mxu0 0.0
    %592 = vmatpush.xpose.msra.mxu0 0.0
    %593 = vmatpush.xpose.msra.mxu0 0.0
    %594 = vmatpush.xpose.msra.mxu0 %v577
    %595 = vmatmul.f32.gmra.mxu0 %v575
    %v596 = vpop.f32.mrf.mxu0
    %v597 = vadd.f32 0.0, %v596
    %598 = vdwg.mxu0
    %599 = vrot.lane.b32.xlu0 %v102, 104
    %v600 = vpop.permute.xlu0 %599
    %601 = vrot.lane.b32.xlu0 %v102, 72
    %v602 = vpop.permute.xlu0 %601
    %v603 = vsel %vm107, %v600, 0
    %v605 = vsel %vm107, %v602, 0
    %607 = vmatpush.xpose.msra.mxu0 0.0
    %608 = vmatpush.xpose.msra.mxu0 0.0
    %609 = vmatpush.xpose.msra.mxu0 0.0
    %610 = vmatpush.xpose.msra.mxu0 0.0
    %611 = vmatpush.xpose.msra.mxu0 0.0
    %612 = vmatpush.xpose.msra.mxu0 0.0
    %613 = vmatpush.xpose.msra.mxu0 0.0
    %614 = vmatpush.xpose.msra.mxu0 0.0
    %615 = vmatpush.xpose.msra.mxu0 0.0
    %616 = vmatpush.xpose.msra.mxu0 0.0
    %617 = vmatpush.xpose.msra.mxu0 0.0
    %618 = vmatpush.xpose.msra.mxu0 0.0
    %619 = vmatpush.xpose.msra.mxu0 0.0
    %620 = vmatpush.xpose.msra.mxu0 0.0
    %621 = vmatpush.xpose.msra.mxu0 0.0
    %622 = vmatpush.xpose.msra.mxu0 %v605
    %623 = vmatmul.f32.gmra.mxu0 %v603
    %v624 = vpop.f32.mrf.mxu0
    %v625 = vadd.f32 0.0, %v624
    %626 = vdwg.mxu0
    %v627 = vsel %vm107, %v597, -inf
    %628 = vmax.xlane.f32.xlu0 %v627
    %v629 = vpop.xlane.xlu0 %628
    %v630 = vsel %vm107, %v625, -inf
    %631 = vmax.xlane.f32.xlu0 %v630
    %v632 = vpop.xlane.xlu0 %631
    %v633 = vsub.f32 %v597, %v629
    %v634 = vsub.f32 %v625, %v632
    %v635 = vmul.f32 %v633, 1.442695
    %v636 = vpow.pop %v635
    %v637 = vmul.f32 %v634, 1.442695
    %v638 = vpow.pop %v637
    %v639 = vsel %vm107, %v636, 0.0
    %640 = vadd.xlane.f32.xlu0 %v639
    %v641 = vpop.xlane.xlu0 %640
    %v642 = vsel %vm107, %v638, 0.0
    %643 = vadd.xlane.f32.xlu0 %v642
    %v644 = vpop.xlane.xlu0 %643
    %v645 = vrcp.pop %v641
    %v646 = vmul.f32 %v641, %v645
    %v647 = vsub.f32 1.0, %v646
    %v648 = vmul.f32 %v645, %v647
    %v649 = vadd.f32 %v645, %v648
    %vm650 = vweird.f32 %v641
    %vm651 = vweird.f32 %v645
    %vm652 = vmor %vm650, %vm651
    %v653 = vsel %vm652, %v645, %v649
    %v654 = vand.u32 2147483647, %v641
    %vm655 = vcmp.eq.f32.partialorder %v654, 8.507059e+37
    %v656 = vand.u32 %v641, 2147483648
    %v657 = vor.u32 1.1754944e-38, %v656
    %v658 = vsel %vm655, %v657, %v653
    %v659 = vrcp.pop %v644
    %v660 = vmul.f32 %v644, %v659
    %v661 = vsub.f32 1.0, %v660
    %v662 = vmul.f32 %v659, %v661
    %v663 = vadd.f32 %v659, %v662
    %vm664 = vweird.f32 %v644
    %vm665 = vweird.f32 %v659
    %vm666 = vmor %vm664, %vm665
    %v667 = vsel %vm666, %v659, %v663
    %v668 = vand.u32 2147483647, %v644
    %vm669 = vcmp.eq.f32.partialorder %v668, 8.507059e+37
    %v670 = vand.u32 %v644, 2147483648
    %v671 = vor.u32 1.1754944e-38, %v670
    %v672 = vsel %vm669, %v671, %v667
    %v673 = vmul.f32 %v636, %v658
    %v674 = vmul.f32 %v638, %v672
    %675 = vrot.lane.b32.xlu0 %v99, 40
    %v676 = vpop.permute.xlu0 %675
    %v679 = vsel %vm107, %v673, 0
    %681 = vmatpush.msra.mxu0 0.0
    %682 = vmatpush.msra.mxu0 0.0
    %683 = vmatpush.msra.mxu0 0.0
    %684 = vmatpush.msra.mxu0 0.0
    %685 = vmatpush.msra.mxu0 0.0
    %686 = vmatpush.msra.mxu0 0.0
    %687 = vmatpush.msra.mxu0 0.0
    %688 = vmatpush.msra.mxu0 0.0
    %689 = vmatpush.msra.mxu0 0.0
    %690 = vmatpush.msra.mxu0 0.0
    %691 = vmatpush.msra.mxu0 0.0
    %692 = vmatpush.msra.mxu0 0.0
    %693 = vmatpush.msra.mxu0 0.0
    %694 = vmatpush.msra.mxu0 0.0
    %695 = vmatpush.msra.mxu0 0.0
    %696 = vmatpush.msra.mxu0 %v676
    %697 = vmatmul.f32.gmra.mxu0 %v679
    %v698 = vpop.f32.mrf.mxu0
    %v699 = vadd.f32 0.0, %v698
    %700 = vdwg.mxu0
    %701 = vrot.lane.b32.xlu0 %v102, 40
    %v702 = vpop.permute.xlu0 %701
    %v705 = vsel %vm107, %v674, 0
    %707 = vmatpush.msra.mxu0 0.0
    %708 = vmatpush.msra.mxu0 0.0
    %709 = vmatpush.msra.mxu0 0.0
    %710 = vmatpush.msra.mxu0 0.0
    %711 = vmatpush.msra.mxu0 0.0
    %712 = vmatpush.msra.mxu0 0.0
    %713 = vmatpush.msra.mxu0 0.0
    %714 = vmatpush.msra.mxu0 0.0
    %715 = vmatpush.msra.mxu0 0.0
    %716 = vmatpush.msra.mxu0 0.0
    %717 = vmatpush.msra.mxu0 0.0
    %718 = vmatpush.msra.mxu0 0.0
    %719 = vmatpush.msra.mxu0 0.0
    %720 = vmatpush.msra.mxu0 0.0
    %721 = vmatpush.msra.mxu0 0.0
    %722 = vmatpush.msra.mxu0 %v702
    %723 = vmatmul.f32.gmra.mxu0 %v705
    %v724 = vpop.f32.mrf.mxu0
    %v725 = vadd.f32 0.0, %v724
    %726 = vdwg.mxu0
    %729 = vrot.lane.b32.xlu0 %v387, 8
    %v730 = vpop.permute.xlu0 %729
    %731 = vrot.lane.b32.xlu0 %v413, 8
    %v732 = vpop.permute.xlu0 %731
    %737 = vrot.lane.b32.xlu0 %v543, 16
    %v738 = vpop.permute.xlu0 %737
    %739 = vrot.lane.b32.xlu0 %v569, 16
    %v740 = vpop.permute.xlu0 %739
    %745 = vrot.lane.b32.xlu0 %v699, 24
    %v746 = vpop.permute.xlu0 %745
    %747 = vrot.lane.b32.xlu0 %v725, 24
    %v748 = vpop.permute.xlu0 %747
    %v751 = vsel %vm107, %v231, %v730
    %v752 = vsel %vm107, %v257, %v732
    %vm753 = vcmask 130048
    %v754 = vsel %vm753, %v751, %v738
    %v755 = vsel %vm753, %v752, %v740
    %vm756 = vcmask 195584
    %v757 = vsel %vm756, %v754, %v746
    %v758 = vsel %vm756, %v755, %v748
    %v759 = vld [vmem:[%s3] sm:$0xff]
    %v760 = vld [vmem:[%s3 + $0x8] sm:$0xff]
    %v761 = vld [vmem:[%s3 + $0x10] sm:$0xff]
    %v762 = vld [vmem:[%s3 + $0x18] sm:$0xff]
    %v763 = vld [vmem:[%s4] sm:$0x1]
    %v765 = vperm.slane %v763, 0
    %v768 = vsel %vm74, %v757, 0
    %v771 = vsel %vm74, %v758, 0
    %773 = vmatpush.msra.mxu0 0.0
    %774 = vmatpush.msra.mxu0 0.0
    %775 = vmatpush.msra.mxu0 0.0
    %776 = vmatpush.msra.mxu0 0.0
    %777 = vmatpush.msra.mxu0 0.0
    %778 = vmatpush.msra.mxu0 0.0
    %779 = vmatpush.msra.mxu0 0.0
    %780 = vmatpush.msra.mxu0 0.0
    %781 = vmatpush.msra.mxu0 0.0
    %782 = vmatpush.msra.mxu0 0.0
    %783 = vmatpush.msra.mxu0 0.0
    %784 = vmatpush.msra.mxu0 0.0
    %785 = vmatpush.msra.mxu0 %v762
    %786 = vmatpush.msra.mxu0 %v761
    %787 = vmatpush.msra.mxu0 %v760
    %788 = vmatpush.msra.mxu0 %v759
    %789 = vmatmul.f32.gmra.mxu0 %v768
    %v790 = vpop.f32.mrf.mxu0
    %v791 = vadd.f32 %v765, %v790
    %792 = vmatmul.f32.gmra.mxu0 %v771
    %v793 = vpop.f32.mrf.mxu0
    %v794 = vadd.f32 %v765, %v793
    %795 = vdwg.mxu0
    %v796 = vadd.f32 %v64, %v791
    %v797 = vadd.f32 %v65, %v794
    %v798 = vsel %vm74, %v796, 0.0
    %799 = vadd.xlane.f32.xlu0 %v798
    %v800 = vpop.xlane.xlu0 %799
    %v801 = vsel %vm74, %v797, 0.0
    %802 = vadd.xlane.f32.xlu0 %v801
    %v803 = vpop.xlane.xlu0 %802
    %v804 = vrcp.pop 32.0
    %v805 = vmul.f32 32.0, %v804
    %v806 = vsub.f32 1.0, %v805
    %v807 = vmul.f32 %v804, %v806
    %v808 = vadd.f32 %v804, %v807
    %vm809 = vweird.f32 %v804
    %v810 = vsel %vm809, %v804, %v808
    %v811 = vmul.f32 %v800, %v810
    %v812 = vmul.f32 %v803, %v810
    %v813 = vsub.f32 %v796, %v811
    %v814 = vsub.f32 %v797, %v812
    %v815 = vmul.f32 %v813, %v813
    %v816 = vmul.f32 %v814, %v814
    %v817 = vsel %vm74, %v815, 0.0
    %818 = vadd.xlane.f32.xlu0 %v817
    %v819 = vpop.xlane.xlu0 %818
    %v820 = vsel %vm74, %v816, 0.0
    %821 = vadd.xlane.f32.xlu0 %v820
    %v822 = vpop.xlane.xlu0 %821
    %v823 = vmul.f32 %v819, %v810
    %v824 = vmul.f32 %v822, %v810
    %v825 = vadd.f32 %v823, 1e-05
    %v826 = vadd.f32 %v824, 1e-05
    %v827 = vrsqrt.pop %v825
    %v828 = vmul.f32 %v827, %v825
    %v829 = vmul.f32 %v828, %v827
    %v830 = vmul.f32 0.5, %v829
    %v831 = vsub.f32 1.5, %v830
    %v832 = vmul.f32 %v827, %v831
    %vm833 = vweird.f32 %v825
    %vm834 = vweird.f32 %v827
    %vm835 = vmor %vm833, %vm834
    %v836 = vsel %vm835, %v827, %v832
    %v837 = vrsqrt.pop %v826
    %v838 = vmul.f32 %v837, %v826
    %v839 = vmul.f32 %v838, %v837
    %v840 = vmul.f32 0.5, %v839
    %v841 = vsub.f32 1.5, %v840
    %v842 = vmul.f32 %v837, %v841
    %vm843 = vweird.f32 %v826
    %vm844 = vweird.f32 %v837
    %vm845 = vmor %vm843, %vm844
    %v846 = vsel %vm845, %v837, %v842
    %v847 = vmul.f32 %v813, %v836
    %v848 = vmul.f32 %v814, %v846
    %v849 = vld [vmem:[%s5] sm:$0x1]
    %v851 = vperm.slane %v849, 0
    %v853 = vmul.f32 %v847, %v851
    %v854 = vmul.f32 %v848, %v851
    %v855 = vld [vmem:[%s6] sm:$0x1]
    %v857 = vperm.slane %v855, 0
    %v859 = vadd.f32 %v853, %v857
    %v860 = vadd.f32 %v854, %v857
    %v861 = vld [vmem:[%s7] sm:$0xff]
    %v862 = vld [vmem:[%s7 + $0x8] sm:$0xff]
    %v863 = vld [vmem:[%s7 + $0x10] sm:$0xff]
    %v864 = vld [vmem:[%s7 + $0x18] sm:$0xff]
    %v865 = vld [vmem:[%s8] sm:$0x1]
    %v867 = vperm.slane %v865, 0
    %v870 = vsel %vm74, %v859, 0
    %v873 = vsel %vm74, %v860, 0
    %875 = vmatpush.msra.mxu0 0.0
    %876 = vmatpush.msra.mxu0 0.0
    %877 = vmatpush.msra.mxu0 0.0
    %878 = vmatpush.msra.mxu0 0.0
    %879 = vmatpush.msra.mxu0 0.0
    %880 = vmatpush.msra.mxu0 0.0
    %881 = vmatpush.msra.mxu0 0.0
    %882 = vmatpush.msra.mxu0 0.0
    %883 = vmatpush.msra.mxu0 0.0
    %884 = vmatpush.msra.mxu0 0.0
    %885 = vmatpush.msra.mxu0 0.0
    %886 = vmatpush.msra.mxu0 0.0
    %887 = vmatpush.msra.mxu0 %v864
    %888 = vmatpush.msra.mxu0 %v863
    %889 = vmatpush.msra.mxu0 %v862
    %890 = vmatpush.msra.mxu0 %v861
    %891 = vmatmul.f32.gmra.mxu0 %v870
    %v892 = vpop.f32.mrf.mxu0
    %v893 = vadd.f32 %v867, %v892
    %894 = vmatmul.f32.gmra.mxu0 %v873
    %v895 = vpop.f32.mrf.mxu0
    %v896 = vadd.f32 %v867, %v895
    %897 = vdwg.mxu0
    %v898 = vmax.f32 %v893, 0.0
    %v899 = vmax.f32 %v896, 0.0
    %v900 = vld [vmem:[%s9] sm:$0xff]
    %v901 = vld [vmem:[%s9 + $0x8] sm:$0xff]
    %v902 = vld [vmem:[%s9 + $0x10] sm:$0xff]
    %v903 = vld [vmem:[%s9 + $0x18] sm:$0xff]
    %v904 = vld [vmem:[%s9 + $0x20] sm:$0xff]
    %v905 = vld [vmem:[%s9 + $0x28] sm:$0xff]
    %v906 = vld [vmem:[%s9 + $0x30] sm:$0xff]
    %v907 = vld [vmem:[%s9 + $0x38] sm:$0xff]
    %v908 = vld [vmem:[%s10] sm:$0x1]
    %v910 = vperm.slane %v908, 0
    %vm912 = vcmask 523264
    %v914 = vsel %vm912, %v898, 0
    %v917 = vsel %vm912, %v899, 0
    %919 = vmatpush.msra.mxu0 0.0
    %920 = vmatpush.msra.mxu0 0.0
    %921 = vmatpush.msra.mxu0 0.0
    %922 = vmatpush.msra.mxu0 0.0
    %923 = vmatpush.msra.mxu0 0.0
    %924 = vmatpush.msra.mxu0 0.0
    %925 = vmatpush.msra.mxu0 0.0
    %926 = vmatpush.msra.mxu0 0.0
    %927 = vmatpush.msra.mxu0 %v907
    %928 = vmatpush.msra.mxu0 %v906
    %929 = vmatpush.msra.mxu0 %v905
    %930 = vmatpush.msra.mxu0 %v904
    %931 = vmatpush.msra.mxu0 %v903
    %932 = vmatpush.msra.mxu0 %v902
    %933 = vmatpush.msra.mxu0 %v901
    %934 = vmatpush.msra.mxu0 %v900
    %935 = vmatmul.f32.gmra.mxu0 %v914
    %v936 = vpop.f32.mrf.mxu0
    %v937 = vadd.f32 %v910, %v936
    %938 = vmatmul.f32.gmra.mxu0 %v917
    %v939 = vpop.f32.mrf.mxu0
    %v940 = vadd.f32 %v910, %v939
    %941 = vdwg.mxu0
    %942 = vst.msk [vmem:[#allocation6] sm:$0xff] %vm74, %v937
    %943 = vst.msk [vmem:[#allocation6 + $0x8] sm:$0xff] %vm74, %v940
    %v944 = vadd.f32 %v859, %v937
    %v945 = vadd.f32 %v860, %v940
    %v946 = vsel %vm74, %v944, 0.0
    %947 = vadd.xlane.f32.xlu0 %v946
    %v948 = vpop.xlane.xlu0 %947
    %v949 = vsel %vm74, %v945, 0.0
    %950 = vadd.xlane.f32.xlu0 %v949
    %v951 = vpop.xlane.xlu0 %950
    %v952 = vmul.f32 %v948, %v810
    %v953 = vmul.f32 %v951, %v810
    %v954 = vsub.f32 %v944, %v952
    %v955 = vsub.f32 %v945, %v953
    %v956 = vmul.f32 %v954, %v954
    %v957 = vmul.f32 %v955, %v955
    %v958 = vsel %vm74, %v956, 0.0
    %959 = vadd.xlane.f32.xlu0 %v958
    %v960 = vpop.xlane.xlu0 %959
    %v961 = vsel %vm74, %v957, 0.0
    %962 = vadd.xlane.f32.xlu0 %v961
    %v963 = vpop.xlane.xlu0 %962
    %v964 = vmul.f32 %v960, %v810
    %v965 = vmul.f32 %v963, %v810
    %v966 = vadd.f32 %v964, 1e-05
    %v967 = vadd.f32 %v965, 1e-05
    %v968 = vrsqrt.pop %v966
    %v969 = vmul.f32 %v968, %v966
    %v970 = vmul.f32 %v969, %v968
    %v971 = vmul.f32 0.5, %v970
    %v972 = vsub.f32 1.5, %v971
    %v973 = vmul.f32 %v968, %v972
    %vm974 = vweird.f32 %v966
    %vm975 = vweird.f32 %v968
    %vm976 = vmor %vm974, %vm975
    %v977 = vsel %vm976, %v968, %v973
    %v978 = vrsqrt.pop %v967
    %v979 = vmul.f32 %v978, %v967
    %v980 = vmul.f32 %v979, %v978
    %v981 = vmul.f32 0.5, %v980
    %v982 = vsub.f32 1.5, %v981
    %v983 = vmul.f32 %v978, %v982
    %vm984 = vweird.f32 %v967
    %vm985 = vweird.f32 %v978
    %vm986 = vmor %vm984, %vm985
    %v987 = vsel %vm986, %v978, %v983
    %v988 = vmul.f32 %v954, %v977
    %v989 = vmul.f32 %v955, %v987
    %v990 = vld [vmem:[%s11] sm:$0x1]
    %v992 = vperm.slane %v990, 0
    %v994 = vmul.f32 %v988, %v992
    %v995 = vmul.f32 %v989, %v992
    %v996 = vld [vmem:[%s12] sm:$0x1]
    %v998 = vperm.slane %v996, 0
    %v1000 = vadd.f32 %v994, %v998
    %v1001 = vadd.f32 %v995, %v998
    %1002 = vst.msk [vmem:[#allocation5] sm:$0xff] %vm74, %v1000
    %1003 = vst.msk [vmem:[#allocation5 + $0x8] sm:$0xff] %vm74, %v1001
    // Predicated region
    $region58: #{tpu_custom_call.1} parent=1 // pred_check
      _
    $region59: #{tpu_custom_call.1} parent=1 // pred_check_branch
      %1005 = sbr.rel (0) target = $region61
    $region60: #{tpu_custom_call.1} parent=1 // pred_region
      %1007 = vsyncadd [#allocation4], 0
      %s1008 = sshll.u32 [#allocation5], 4
      %s1009 = int_to_ptr.vmem [resolvable:$true] %s1008
      %s1010 = sshll.u32 %s13, 4
      %s1011 = int_to_ptr.hbm [resolvable:$true] %s1010
      %1016 = dma.vmem_to_hbm [thread:$0]  %s1009, 256, %s1011, [#allocation4], 128, 128, 8
    $region61: #{tpu_custom_call.1} parent=1 // pred_fallthru
      _
    // Predicated region
    $region62: #{tpu_custom_call.1} parent=1 // pred_check
      _
    $region63: #{tpu_custom_call.1} parent=1 // pred_check_branch
      %1018 = sbr.rel (0) target = $region65
    $region64: #{tpu_custom_call.1} parent=1 // pred_region
      %1020 = vsyncadd [#allocation7], 0
      %s1021 = sshll.u32 [#allocation6], 4
      %s1022 = int_to_ptr.vmem [resolvable:$true] %s1021
      %s1023 = sshll.u32 %s14, 4
      %s1024 = int_to_ptr.hbm [resolvable:$true] %s1023
      %1029 = dma.vmem_to_hbm [thread:$0]  %s1022, 256, %s1024, [#allocation7], 128, 128, 8
    $region65: #{tpu_custom_call.1} parent=1 // pred_fallthru
      _
    // Predicated region
    $region66: #{tpu_custom_call.1} parent=1 // pred_check
      _
    $region67: #{tpu_custom_call.1} parent=1 // pred_check_branch
      %1031 = sbr.rel (0) target = $region69
    $region68: #{tpu_custom_call.1} parent=1 // pred_region
      %1033 = dma.done [#allocation4], 256
    $region69: #{tpu_custom_call.1} parent=1 // pred_fallthru
      _
    // Predicated region
    $region70: #{tpu_custom_call.1} parent=1 // pred_check
      _
    $region71: #{tpu_custom_call.1} parent=1 // pred_check_branch
      %1035 = sbr.rel (0) target = $region73
    $region72: #{tpu_custom_call.1} parent=1 // pred_region
      %1037 = dma.done [#allocation7], 256
    $region73: #{tpu_custom_call.1} parent=1 // pred_fallthru
      _
    %1038 = vsyncpa [#allocation3], 1
    %1039 = vsyncpa [#allocation4], 1
    %1040 = vsyncpa [#allocation7], 1

</llo_original>
